<compile_context>
chip_gen: v7x
topology: tpu7x:2x2x1
jax: 0.10.0
libtpu: 0.0.40
codegen_flags: <defaults>
</compile_context>

<pallas_src>
import jax
import jax.numpy as jnp
from jax.experimental import pallas as pl
from jax.experimental.pallas import tpu as pltpu

NMAP = 10  # size of the fixed Map buffer == hidden width of NLTras


# ------------------------------ Pallas kernel --------------------------------
def _get_alpha_kernel(e_ref, w123_ref, vecs_ref, w4_ref, b4_ref, s_ref, t_ref,
                      out_ref):
    """Fused GetAlpha forward for one (TB, .) batch stripe.

    e_ref:    (TB, 1)     f32  per-sample gaussian noise
    w123_ref: (3, 10, 10) bf16 stacked pre-transposed w1.T, w2.T, w3.T
    vecs_ref: (6, 10)     f32  rows: b1, b2, b3, c0=sig*Map^2, c1=2*sig*Map, sig
    w4_ref:   (10, D)     bf16 pre-transposed last-layer weight
    b4_ref:   (1, D)      f32
    s_ref:    (D, nc)     f32  S[j*nc+k, k'] = (k==k')   (sum over ndict)
    t_ref:    (nc, D)     f32  T[k', j*nc+k] = (k==k')   (broadcast back)
    out_ref:  (TB, D)     f32  normalized Mat, flat over (ndict, nc)
    """
    e = e_ref[...]                                   # (TB, 1)
    b1 = vecs_ref[0:1, :]
    b2 = vecs_ref[1:2, :]
    b3 = vecs_ref[2:3, :]
    c0 = vecs_ref[3:4, :]
    c1 = vecs_ref[4:5, :]
    sig = vecs_ref[5:6, 0:1]                         # (1, 1)

    # inCoef = exp(sig*(Map - e)^2) = exp(c0 - c1*e + sig*e^2)   (exp -> EUP)
    h = jnp.exp(c0 + e * (sig * e - c1))             # (TB, 10) f32

    # Hidden MLP: bf16 operands on the MXU, f32 accumulation, bias/ReLU in f32.
    h = jnp.maximum(
        jnp.dot(h.astype(jnp.bfloat16), w123_ref[0],
                preferred_element_type=jnp.float32) + b1, 0.0)
    h = jnp.maximum(
        jnp.dot(h.astype(jnp.bfloat16), w123_ref[1],
                preferred_element_type=jnp.float32) + b2, 0.0)
    h = jnp.maximum(
        jnp.dot(h.astype(jnp.bfloat16), w123_ref[2],
                preferred_element_type=jnp.float32) + b3, 0.0)
    mat = jnp.dot(h.astype(jnp.bfloat16), w4_ref[...],
                  preferred_element_type=jnp.float32) + b4_ref[...]   # (TB, D)

    # Normalization (kept f32): per-nc-column sums over the ndict axis via a
    # factored O(TB*D*nc) matmul, EUP reciprocal, broadcast back, VPU multiply.
    sums = jnp.dot(mat, s_ref[...], preferred_element_type=jnp.float32)     # (TB, nc)
    recip = pl.reciprocal(sums, approx=True)
    denom_recip = jnp.dot(recip, t_ref[...],
                          preferred_element_type=jnp.float32)                # (TB, D)
    out_ref[...] = mat * denom_recip


# --------------------------------- wrapper ------------------------------------
def _default_batch_tile(B):
    """Single step for small B; ~1-2k row stripes (>=2 steps) for large B."""
    if B <= 1024:
        return B
    for cand in (2048, 1024, 512, 256, 128, 64, 32, 16, 8):
        if B % cand == 0 and cand <= B // 2:
            return cand
    return B


def get_alpha_forward(e, params, ndict, nc, *, batch_tile=None):
    """e: (B, 1) float32 noise; params from init_params. Returns (B, ndict, nc)."""
    sig, w1, b1, w2, b2, w3, b3, w4, b4 = params
    B = e.shape[0]
    D = ndict * nc
    f32 = jnp.float32

    if batch_tile is None:
        batch_tile = _default_batch_tile(B)
    assert B % batch_tile == 0, "batch must be divisible by batch_tile"
    assert batch_tile % 8 == 0 or batch_tile == B, "batch_tile must be sublane-aligned"

    # ---- constant / parameter plumbing (tiny, stays in JAX glue) ----
    Map = jnp.arange(NMAP, dtype=f32) / NMAP + 0.05                     # (10,)
    sig_s = jnp.reshape(sig.astype(f32), ())
    c0 = sig_s * Map * Map
    c1 = 2.0 * sig_s * Map
    sig_row = jnp.broadcast_to(sig_s, (NMAP,))
    vecs = jnp.stack(
        [b1.reshape(NMAP).astype(f32), b2.reshape(NMAP).astype(f32),
         b3.reshape(NMAP).astype(f32), c0, c1, sig_row], axis=0)        # (6, 10)

    w123 = jnp.stack([w1.T, w2.T, w3.T], axis=0).astype(jnp.bfloat16)   # (3,10,10)
    w4t = w4.T.astype(jnp.bfloat16)                                     # (10, D)
    b4f = b4.reshape(1, D).astype(f32)

    eye = jnp.eye(nc, dtype=f32)
    S = jnp.tile(eye, (ndict, 1))                                       # (D, nc)
    T = jnp.tile(eye, (1, ndict))                                       # (nc, D)
    e = e.astype(f32)

    # ---- VMEM budget: double-buffered blocks + activation temps, with headroom,
    #      capped at v7x's 64 MiB physical VMEM. ----
    est = (2 * batch_tile * D * 4                      # output block x2
           + 2 * batch_tile * 4                        # e block x2
           + 2 * (3 * NMAP * NMAP * 2 + 6 * NMAP * 4   # constants x2
                  + NMAP * D * 2 + D * 4 + D * nc * 4 + nc * D * 4)
           + 6 * batch_tile * NMAP * 4                 # (TB,10) temps
           + 4 * batch_tile * D * 4)                   # (TB,D) temps
    vmem_limit = int(min(64 * 1024 * 1024, max(16 * 1024 * 1024, 2 * est)))

    rep2 = lambda i: (0, 0)          # replicated constants
    rep3 = lambda i: (0, 0, 0)
    bt = lambda i: (i, 0)            # batch-tiled

    out_flat = pl.pallas_call(
        _get_alpha_kernel,
        out_shape=jax.ShapeDtypeStruct((B, D), f32),
        grid_spec=pltpu.PrefetchScalarGridSpec(
            num_scalar_prefetch=0,
            grid=(B // batch_tile,),
            in_specs=[
                pl.BlockSpec((batch_tile, 1), bt),      # e
                pl.BlockSpec((3, NMAP, NMAP), rep3),    # stacked w1t,w2t,w3t (bf16)
                pl.BlockSpec((6, NMAP), rep2),          # b1,b2,b3,c0,c1,sig (f32)
                pl.BlockSpec((NMAP, D), rep2),          # w4.T (bf16)
                pl.BlockSpec((1, D), rep2),             # b4
                pl.BlockSpec((D, nc), rep2),            # S
                pl.BlockSpec((nc, D), rep2),            # T
            ],
            out_specs=pl.BlockSpec((batch_tile, D), bt),
        ),
        compiler_params=pltpu.CompilerParams(
            dimension_semantics=("parallel",),
            vmem_limit_bytes=vmem_limit,
        ),
    )(e, w123, vecs, w4t, b4f, S, T)

    return out_flat.reshape(B, ndict, nc)


# ------------------------- deterministic parameter build ----------------------
def init_params(key, ndict, nc):
    """Replicates GetAlpha.__init__ parameter shapes/statistics deterministically."""
    def nnlevel(k, m, n):
        w = (jax.random.normal(k, (n, m), dtype=jnp.float32) / 3.0 + 1.0) / m
        b = jnp.full((1, n), -0.1, dtype=jnp.float32)
        return w, b

    k1, k2, k3, k4 = jax.random.split(key, 4)
    w1, b1 = nnlevel(k1, NMAP, NMAP)
    w2, b2 = nnlevel(k2, NMAP, NMAP)
    w3, b3 = nnlevel(k3, NMAP, NMAP)
    w4, b4 = nnlevel(k4, NMAP, ndict * nc)
    sig = jnp.ones((1,), jnp.float32)
    return (sig, w1, b1, w2, b2, w3, b3, w4, b4)


# ----------------------------- pure-JAX reference ------------------------------
def get_alpha_reference(e, params, ndict, nc):
    sig, w1, b1, w2, b2, w3, b3, w4, b4 = params
    Map = (jnp.arange(NMAP, dtype=jnp.float32) / NMAP + 0.05)[None, :]
    inCoef = jnp.exp((Map - e) * (Map - e) * sig.reshape(1, 1))
    h = jnp.maximum(jnp.dot(inCoef, w1.T) + b1, 0.0)
    h = jnp.maximum(jnp.dot(h, w2.T) + b2, 0.0)
    h = jnp.maximum(jnp.dot(h, w3.T) + b3, 0.0)
    Mat = jnp.dot(h, w4.T) + b4
    Mat = Mat.reshape(e.shape[0], ndict, nc)
    return Mat / jnp.sum(Mat, axis=1, keepdims=True)


if __name__ == "__main__":
    key = jax.random.PRNGKey(0)
    kp, ke = jax.random.split(key)

    ndict, nc = 8, 4
    batchsize = 16

    params = init_params(kp, ndict, nc)
    # TODO(synk): torch.randn(batchsize, 1) inside forward() has no in-kernel
    # equivalent here; it is drawn deterministically host-side instead.
    e = jax.random.normal(ke, (batchsize, 1), dtype=jnp.float32)

    out = get_alpha_forward(e, params, ndict, nc)   # default tile => 1 grid step
    out = jax.block_until_ready(out)

    ref = get_alpha_reference(e, params, ndict, nc)
    assert out.shape == (batchsize, ndict, nc), out.shape
    # Tolerance accounts for bf16 MXU operands in the hidden layers and the
    # approximate EUP reciprocal (f32-reference deviation is ~1e-2 worst case).
    assert jnp.allclose(out, ref, rtol=5e-2, atol=5e-3), (out, ref)
    assert bool(jnp.all(jnp.isfinite(out)))

    print("KERNEL_OK")
</pallas_src>

<mosaic_0001>
module attributes {stable_mosaic.version = 11 : i64} {
  func.func @_get_alpha_kernel(%arg0: i32, %arg1: memref<16x1xf32, #tpu.memory_space<vmem>>, %arg2: memref<3x10x10xbf16, #tpu.memory_space<vmem>>, %arg3: memref<6x10xf32, #tpu.memory_space<vmem>>, %arg4: memref<10x32xbf16, #tpu.memory_space<vmem>>, %arg5: memref<1x32xf32, #tpu.memory_space<vmem>>, %arg6: memref<32x4xf32, #tpu.memory_space<vmem>>, %arg7: memref<4x32xf32, #tpu.memory_space<vmem>>, %arg8: memref<16x32xf32, #tpu.memory_space<vmem>>) attributes {dimension_semantics = [#tpu.dimension_semantics<parallel>], iteration_bounds = array<i64: 1>, scalar_prefetch = 0 : i64, scratch_operands = 0 : i64, tpu.core_type = #tpu.core_type<tc>, window_params = [{transform_indices = @transform_0, window_bounds = array<i64: 16, 1>}, {pipeline_mode = #tpu.pipeline_mode<synchronous>, transform_indices = @transform_1, window_bounds = array<i64: 3, 10, 10>}, {pipeline_mode = #tpu.pipeline_mode<synchronous>, transform_indices = @transform_2, window_bounds = array<i64: 6, 10>}, {pipeline_mode = #tpu.pipeline_mode<synchronous>, transform_indices = @transform_3, window_bounds = array<i64: 10, 32>}, {pipeline_mode = #tpu.pipeline_mode<synchronous>, transform_indices = @transform_4, window_bounds = array<i64: 1, 32>}, {pipeline_mode = #tpu.pipeline_mode<synchronous>, transform_indices = @transform_5, window_bounds = array<i64: 32, 4>}, {pipeline_mode = #tpu.pipeline_mode<synchronous>, transform_indices = @transform_6, window_bounds = array<i64: 4, 32>}, {transform_indices = @transform_7, window_bounds = array<i64: 16, 32>}]} {
    %c0 = arith.constant 0 : index
    %c0_0 = arith.constant 0 : index
    %0 = vector.load %arg1[%c0, %c0_0] : memref<16x1xf32, #tpu.memory_space<vmem>>, vector<16x1xf32>
    %c0_1 = arith.constant 0 : index
    %c0_2 = arith.constant 0 : index
    %1 = vector.load %arg3[%c0_1, %c0_2] : memref<6x10xf32, #tpu.memory_space<vmem>>, vector<1x10xf32>
    %c1 = arith.constant 1 : index
    %c0_3 = arith.constant 0 : index
    %2 = vector.load %arg3[%c1, %c0_3] : memref<6x10xf32, #tpu.memory_space<vmem>>, vector<1x10xf32>
    %c2 = arith.constant 2 : index
    %c0_4 = arith.constant 0 : index
    %3 = vector.load %arg3[%c2, %c0_4] : memref<6x10xf32, #tpu.memory_space<vmem>>, vector<1x10xf32>
    %c3 = arith.constant 3 : index
    %c0_5 = arith.constant 0 : index
    %4 = vector.load %arg3[%c3, %c0_5] : memref<6x10xf32, #tpu.memory_space<vmem>>, vector<1x10xf32>
    %c4 = arith.constant 4 : index
    %c0_6 = arith.constant 0 : index
    %5 = vector.load %arg3[%c4, %c0_6] : memref<6x10xf32, #tpu.memory_space<vmem>>, vector<1x10xf32>
    %c5 = arith.constant 5 : index
    %c0_7 = arith.constant 0 : index
    %6 = vector.load %arg3[%c5, %c0_7] : memref<6x10xf32, #tpu.memory_space<vmem>>, vector<1x1xf32>
    %7 = vector.broadcast %6 : vector<1x1xf32> to vector<16x1xf32>
    %8 = arith.mulf %7, %0 : vector<16x1xf32>
    %9 = vector.broadcast %8 : vector<16x1xf32> to vector<16x10xf32>
    %10 = vector.broadcast %5 : vector<1x10xf32> to vector<16x10xf32>
    %11 = arith.subf %9, %10 : vector<16x10xf32>
    %12 = vector.broadcast %0 : vector<16x1xf32> to vector<16x10xf32>
    %13 = arith.mulf %12, %11 : vector<16x10xf32>
    %14 = vector.broadcast %4 : vector<1x10xf32> to vector<16x10xf32>
    %15 = arith.addf %14, %13 : vector<16x10xf32>
    %16 = math.exp %15 : vector<16x10xf32>
    %17 = arith.truncf %16 : vector<16x10xf32> to vector<16x10xbf16>
    %c0_8 = arith.constant 0 : index
    %c0_9 = arith.constant 0 : index
    %c0_10 = arith.constant 0 : index
    %18 = vector.load %arg2[%c0_8, %c0_9, %c0_10] : memref<3x10x10xbf16, #tpu.memory_space<vmem>>, vector<1x10x10xbf16>
    %19 = vector.shape_cast %18 : vector<1x10x10xbf16> to vector<10x10xbf16>
    %cst = arith.constant dense<0.000000e+00> : vector<16x10xf32>
    %20 = tpu.matmul %17, %19, %cst {dimension_numbers = #tpu.dot_dimension_numbers<[1], [0], [0], [1], [0, 0, 1, 1], [], []>} : vector<16x10xbf16>, vector<10x10xbf16>, vector<16x10xf32> -> vector<16x10xf32>
    %21 = vector.broadcast %1 : vector<1x10xf32> to vector<16x10xf32>
    %22 = arith.addf %20, %21 : vector<16x10xf32>
    %cst_11 = arith.constant 0.000000e+00 : f32
    %23 = vector.broadcast %cst_11 : f32 to vector<16x10xf32>
    %24 = arith.maximumf %22, %23 : vector<16x10xf32>
    %25 = arith.truncf %24 : vector<16x10xf32> to vector<16x10xbf16>
    %c1_12 = arith.constant 1 : index
    %c0_13 = arith.constant 0 : index
    %c0_14 = arith.constant 0 : index
    %26 = vector.load %arg2[%c1_12, %c0_13, %c0_14] : memref<3x10x10xbf16, #tpu.memory_space<vmem>>, vector<1x10x10xbf16>
    %27 = vector.shape_cast %26 : vector<1x10x10xbf16> to vector<10x10xbf16>
    %cst_15 = arith.constant dense<0.000000e+00> : vector<16x10xf32>
    %28 = tpu.matmul %25, %27, %cst_15 {dimension_numbers = #tpu.dot_dimension_numbers<[1], [0], [0], [1], [0, 0, 1, 1], [], []>} : vector<16x10xbf16>, vector<10x10xbf16>, vector<16x10xf32> -> vector<16x10xf32>
    %29 = vector.broadcast %2 : vector<1x10xf32> to vector<16x10xf32>
    %30 = arith.addf %28, %29 : vector<16x10xf32>
    %cst_16 = arith.constant 0.000000e+00 : f32
    %31 = vector.broadcast %cst_16 : f32 to vector<16x10xf32>
    %32 = arith.maximumf %30, %31 : vector<16x10xf32>
    %33 = arith.truncf %32 : vector<16x10xf32> to vector<16x10xbf16>
    %c2_17 = arith.constant 2 : index
    %c0_18 = arith.constant 0 : index
    %c0_19 = arith.constant 0 : index
    %34 = vector.load %arg2[%c2_17, %c0_18, %c0_19] : memref<3x10x10xbf16, #tpu.memory_space<vmem>>, vector<1x10x10xbf16>
    %35 = vector.shape_cast %34 : vector<1x10x10xbf16> to vector<10x10xbf16>
    %cst_20 = arith.constant dense<0.000000e+00> : vector<16x10xf32>
    %36 = tpu.matmul %33, %35, %cst_20 {dimension_numbers = #tpu.dot_dimension_numbers<[1], [0], [0], [1], [0, 0, 1, 1], [], []>} : vector<16x10xbf16>, vector<10x10xbf16>, vector<16x10xf32> -> vector<16x10xf32>
    %37 = vector.broadcast %3 : vector<1x10xf32> to vector<16x10xf32>
    %38 = arith.addf %36, %37 : vector<16x10xf32>
    %cst_21 = arith.constant 0.000000e+00 : f32
    %39 = vector.broadcast %cst_21 : f32 to vector<16x10xf32>
    %40 = arith.maximumf %38, %39 : vector<16x10xf32>
    %41 = arith.truncf %40 : vector<16x10xf32> to vector<16x10xbf16>
    %c0_22 = arith.constant 0 : index
    %c0_23 = arith.constant 0 : index
    %42 = vector.load %arg4[%c0_22, %c0_23] : memref<10x32xbf16, #tpu.memory_space<vmem>>, vector<10x32xbf16>
    %cst_24 = arith.constant dense<0.000000e+00> : vector<16x32xf32>
    %43 = tpu.matmul %41, %42, %cst_24 {dimension_numbers = #tpu.dot_dimension_numbers<[1], [0], [0], [1], [0, 0, 1, 1], [], []>} : vector<16x10xbf16>, vector<10x32xbf16>, vector<16x32xf32> -> vector<16x32xf32>
    %c0_25 = arith.constant 0 : index
    %c0_26 = arith.constant 0 : index
    %44 = vector.load %arg5[%c0_25, %c0_26] : memref<1x32xf32, #tpu.memory_space<vmem>>, vector<1x32xf32>
    %45 = vector.broadcast %44 : vector<1x32xf32> to vector<16x32xf32>
    %46 = arith.addf %43, %45 : vector<16x32xf32>
    %c0_27 = arith.constant 0 : index
    %c0_28 = arith.constant 0 : index
    %47 = vector.load %arg6[%c0_27, %c0_28] : memref<32x4xf32, #tpu.memory_space<vmem>>, vector<32x4xf32>
    %cst_29 = arith.constant dense<0.000000e+00> : vector<16x4xf32>
    %48 = tpu.matmul %46, %47, %cst_29 {dimension_numbers = #tpu.dot_dimension_numbers<[1], [0], [0], [1], [0, 0, 1, 1], [], []>} : vector<16x32xf32>, vector<32x4xf32>, vector<16x4xf32> -> vector<16x4xf32>
    %49 = tpu.reciprocal %48 {approx = true} : vector<16x4xf32> -> vector<16x4xf32>
    %c0_30 = arith.constant 0 : index
    %c0_31 = arith.constant 0 : index
    %50 = vector.load %arg7[%c0_30, %c0_31] : memref<4x32xf32, #tpu.memory_space<vmem>>, vector<4x32xf32>
    %cst_32 = arith.constant dense<0.000000e+00> : vector<16x32xf32>
    %51 = tpu.matmul %49, %50, %cst_32 {dimension_numbers = #tpu.dot_dimension_numbers<[1], [0], [0], [1], [0, 0, 1, 1], [], []>} : vector<16x4xf32>, vector<4x32xf32>, vector<16x32xf32> -> vector<16x32xf32>
    %52 = arith.mulf %46, %51 : vector<16x32xf32>
    %c0_33 = arith.constant 0 : index
    %c0_34 = arith.constant 0 : index
    %53 = vector.load %arg8[%c0_33, %c0_34] : memref<16x32xf32, #tpu.memory_space<vmem>>, vector<16x32xf32>
    tpu.vector_store %arg8[%c0_33, %c0_34], %52 {strides = array<i32>} : memref<16x32xf32, #tpu.memory_space<vmem>>, vector<16x32xf32>,
    return
  }
  func.func @transform_0(%arg0: i32) -> (i32, i32) {
    %c0_i32 = arith.constant 0 : i32
    %c0_i32_0 = arith.constant 0 : i32
    return %arg0, %c0_i32 : i32, i32
  }
  func.func @transform_1(%arg0: i32) -> (i32, i32, i32) {
    %c0_i32 = arith.constant 0 : i32
    %c0_i32_0 = arith.constant 0 : i32
    %c0_i32_1 = arith.constant 0 : i32
    %c0_i32_2 = arith.constant 0 : i32
    return %c0_i32, %c0_i32_0, %c0_i32_1 : i32, i32, i32
  }
  func.func @transform_2(%arg0: i32) -> (i32, i32) {
    %c0_i32 = arith.constant 0 : i32
    %c0_i32_0 = arith.constant 0 : i32
    %c0_i32_1 = arith.constant 0 : i32
    return %c0_i32, %c0_i32_0 : i32, i32
  }
  func.func @transform_3(%arg0: i32) -> (i32, i32) {
    %c0_i32 = arith.constant 0 : i32
    %c0_i32_0 = arith.constant 0 : i32
    %c0_i32_1 = arith.constant 0 : i32
    return %c0_i32, %c0_i32_0 : i32, i32
  }
  func.func @transform_4(%arg0: i32) -> (i32, i32) {
    %c0_i32 = arith.constant 0 : i32
    %c0_i32_0 = arith.constant 0 : i32
    %c0_i32_1 = arith.constant 0 : i32
    return %c0_i32, %c0_i32_0 : i32, i32
  }
  func.func @transform_5(%arg0: i32) -> (i32, i32) {
    %c0_i32 = arith.constant 0 : i32
    %c0_i32_0 = arith.constant 0 : i32
    %c0_i32_1 = arith.constant 0 : i32
    return %c0_i32, %c0_i32_0 : i32, i32
  }
  func.func @transform_6(%arg0: i32) -> (i32, i32) {
    %c0_i32 = arith.constant 0 : i32
    %c0_i32_0 = arith.constant 0 : i32
    %c0_i32_1 = arith.constant 0 : i32
    return %c0_i32, %c0_i32_0 : i32, i32
  }
  func.func @transform_7(%arg0: i32) -> (i32, i32) {
    %c0_i32 = arith.constant 0 : i32
    %c0_i32_0 = arith.constant 0 : i32
    return %arg0, %c0_i32 : i32, i32
  }
}

</mosaic_0001>

<llo_original>
// kernel: tpu_custom_call.1
$region0: #{tpu_custom_call.1}
  #allocation0 [shape = 'u32[]', space=smem, size = 0x4, offset = 0x4, fixed_abs, tag = 'smem constant byte address 0x4 - core index']
  #allocation1 [shape = 'u32[144,128]{1,0:T(1,128)}', space=vmem, size = 0x12000, scoped, tag = 'internal scratch']
  %s0 = inlined_call_operand.vmem [shape: f32[16,1], index: 0, kind: input, shape index: {}]
  %s1 = inlined_call_operand.vmem [shape: bf16[3,10,10], index: 1, kind: input, shape index: {}]
  %s2 = inlined_call_operand.vmem [shape: f32[6,10], index: 2, kind: input, shape index: {}]
  %s3 = inlined_call_operand.vmem [shape: bf16[10,32], index: 3, kind: input, shape index: {}]
  %s4 = inlined_call_operand.vmem [shape: f32[1,32], index: 4, kind: input, shape index: {}]
  %s5 = inlined_call_operand.vmem [shape: f32[32,4], index: 5, kind: input, shape index: {}]
  %s6 = inlined_call_operand.vmem [shape: f32[4,32], index: 6, kind: input, shape index: {}]
  %s7 = inlined_call_operand.hbm [shape: f32[16,32], index: 7, kind: output, shape index: {}]
  %s8 = sld [smem:[#allocation0]]
  $region38: #{tpu_custom_call.1} parent=0
    _
  %s10 = ssub.s32 1, %s8
  %s11 = scalar_select 0, %s10, %s8
  $region1: #{tpu_custom_call.1} parent=0
    #allocation2 [shape = 'u8[8192]{0}', space=vmem, size = 0x2000, scoped, tag = 'output window, operand 0, single buffered']
    #allocation3 [shape = 's32[1]{0}', space=sflag, size = 0x4, scoped, tag = 'scoped memory for tpu_custom_call.1']
    %12 = vsyncpa [#allocation3], 0
    // Predicated region
    $region2: #{tpu_custom_call.1} parent=1 // pred_check
      _
    $region3: #{tpu_custom_call.1} parent=1 // pred_check_branch
      %14 = sbr.rel (0) target = $region5
    $region4: #{tpu_custom_call.1} parent=1 // pred_region
      _
    $region5: #{tpu_custom_call.1} parent=1 // pred_fallthru
      _
    // Predicated region
    $region6: #{tpu_custom_call.1} parent=1 // pred_check
      _
    $region7: #{tpu_custom_call.1} parent=1 // pred_check_branch
      %16 = sbr.rel (0) target = $region9
    $region8: #{tpu_custom_call.1} parent=1 // pred_region
      _
    $region9: #{tpu_custom_call.1} parent=1 // pred_fallthru
      _
    // Predicated region
    $region10: #{tpu_custom_call.1} parent=1 // pred_check
      _
    $region11: #{tpu_custom_call.1} parent=1 // pred_check_branch
      %18 = sbr.rel (0) target = $region13
    $region12: #{tpu_custom_call.1} parent=1 // pred_region
      _
    $region13: #{tpu_custom_call.1} parent=1 // pred_fallthru
      _
    // Predicated region
    $region14: #{tpu_custom_call.1} parent=1 // pred_check
      _
    $region15: #{tpu_custom_call.1} parent=1 // pred_check_branch
      %20 = sbr.rel (0) target = $region17
    $region16: #{tpu_custom_call.1} parent=1 // pred_region
      _
    $region17: #{tpu_custom_call.1} parent=1 // pred_fallthru
      _
    // Predicated region
    $region18: #{tpu_custom_call.1} parent=1 // pred_check
      _
    $region19: #{tpu_custom_call.1} parent=1 // pred_check_branch
      %22 = sbr.rel (0) target = $region21
    $region20: #{tpu_custom_call.1} parent=1 // pred_region
      _
    $region21: #{tpu_custom_call.1} parent=1 // pred_fallthru
      _
    // Predicated region
    $region22: #{tpu_custom_call.1} parent=1 // pred_check
      _
    $region23: #{tpu_custom_call.1} parent=1 // pred_check_branch
      %24 = sbr.rel (0) target = $region25
    $region24: #{tpu_custom_call.1} parent=1 // pred_region
      _
    $region25: #{tpu_custom_call.1} parent=1 // pred_fallthru
      _
    // Predicated region
    $region26: #{tpu_custom_call.1} parent=1 // pred_check
      _
    $region27: #{tpu_custom_call.1} parent=1 // pred_check_branch
      %26 = sbr.rel (0) target = $region29
    $region28: #{tpu_custom_call.1} parent=1 // pred_region
      _
    $region29: #{tpu_custom_call.1} parent=1 // pred_fallthru
      _
    %v28 = vld [vmem:[%s0] sm:$0xff]
    %v29 = vld [vmem:[%s0 + $0x8] sm:$0xff]
    %v30 = vld [vmem:[%s2] sm:$0x1]
    %v31 = vld [vmem:[%s2 + $0x1] sm:$0x1]
    %v32 = vld [vmem:[%s2 + $0x2] sm:$0x1]
    %v33 = vld [vmem:[%s2 + $0x3] sm:$0x1]
    %v34 = vld [vmem:[%s2 + $0x4] sm:$0x1]
    %v35 = vld [vmem:[%s2 + $0x5] sm:$0x1]
    %v36 = vlaneseq
    %v37 = vshrl.u32 %v36, 7
    %v38 = vsub.s32 0, %v37
    %v39 = vrot.slane %v35, %v38
    %v40 = vmul.f32 %v39, %v28
    %v41 = vmul.f32 %v39, %v29
    %43 = vset.pattern.permute.xlu0 0
    %44 = vperm.xlu0 %43, %v40
    %v45 = vpop.permute.xlu0 %44
    %48 = vset.pattern.permute.xlu0 0
    %49 = vperm.xlu0 %48, %v41
    %v50 = vpop.permute.xlu0 %49
    %v52 = vlaneseq
    %v53 = vshrl.u32 %v52, 7
    %v54 = vsub.s32 0, %v53
    %v55 = vrot.slane %v34, %v54
    %v56 = vsub.f32 %v45, %v55
    %v57 = vsub.f32 %v50, %v55
    %59 = vset.pattern.permute.xlu0 0
    %60 = vperm.xlu0 %59, %v28
    %v61 = vpop.permute.xlu0 %60
    %64 = vset.pattern.permute.xlu0 0
    %65 = vperm.xlu0 %64, %v29
    %v66 = vpop.permute.xlu0 %65
    %v68 = vmul.f32 %v61, %v56
    %v69 = vmul.f32 %v66, %v57
    %v70 = vlaneseq
    %v71 = vshrl.u32 %v70, 7
    %v72 = vsub.s32 0, %v71
    %v73 = vrot.slane %v33, %v72
    %v74 = vadd.f32 %v73, %v68
    %v75 = vadd.f32 %v73, %v69
    %v76 = vmul.f32 %v74, 1.442695
    %v77 = vpow.pop %v76
    %v78 = vmul.f32 %v75, 1.442695
    %v79 = vpow.pop %v78
    %v80 = vpack.c.bf16 %v79, %v77
    %v81 = vld [vmem:[%s1] sm:$0xf]
    %v82 = vld [vmem:[%s1 + $0x4] sm:$0x1]
    %v83 = vlaneseq
    %v84 = vshrl.u32 %v83, 7
    %v85 = vsub.s32 0, %v84
    %v86 = vrot.slane %v30, %v85
    %v89 = vunpack.c.l.b16 %v81
    %v90 = vunpack.c.l.b16 %v82
    %v91 = vpack.c.b16 %v90, %v89
    %vm92 = vcmask 80896
    %v94 = vsel %vm92, %v80, 0
    %vm96 = vcmask 1044480
    %v98 = vsel %vm96, %v91, 0
    %100 = vmatprep.subr.bf16.mxu0 0
    %101 = vmatpush1.bf16.msra.mxu0 %v98
    %102 = vmatprep.subr.bf16.mxu0 0
    %103 = vmatpush1.bf16.msra.mxu0 0
    %104 = vmatprep.subr.bf16.mxu0 0
    %105 = vmatpush1.bf16.msra.mxu0 0
    %106 = vmatprep.subr.bf16.mxu0 0
    %107 = vmatpush1.bf16.msra.mxu0 0
    %108 = vmatprep.subr.bf16.mxu0 0
    %109 = vmatpush1.bf16.msra.mxu0 0
    %110 = vmatprep.subr.bf16.mxu0 0
    %111 = vmatpush1.bf16.msra.mxu0 0
    %112 = vmatprep.subr.bf16.mxu0 0
    %113 = vmatpush1.bf16.msra.mxu0 0
    %114 = vmatprep.subr.bf16.mxu0 0
    %115 = vmatpush1.bf16.msra.mxu0 0
    %116 = vmatprep.subr.bf16.mxu0 0
    %117 = vmatpush1.bf16.msra.mxu0 0
    %118 = vmatprep.subr.bf16.mxu0 0
    %119 = vmatpush1.bf16.msra.mxu0 0
    %120 = vmatprep.subr.bf16.mxu0 0
    %121 = vmatpush1.bf16.msra.mxu0 0
    %122 = vmatprep.subr.bf16.mxu0 0
    %123 = vmatpush1.bf16.msra.mxu0 0
    %124 = vmatprep.subr.bf16.mxu0 0
    %125 = vmatpush1.bf16.msra.mxu0 0
    %126 = vmatprep.subr.bf16.mxu0 0
    %127 = vmatpush1.bf16.msra.mxu0 0
    %128 = vmatprep.subr.bf16.mxu0 0
    %129 = vmatpush1.bf16.msra.mxu0 0
    %130 = vmatprep.subr.bf16.mxu0 0
    %131 = vmatpush1.bf16.msra.mxu0 0
    %132 = vmatprep.mubr.bf16.mxu0 0
    %133 = vmatmul.mubr.bf16.gmra.mrb[0].mxu0 %v94
    %v134 = vpop.f32.mrb[0].mxu0
    %v135 = vadd.f32 %v86, %v134
    %v136 = vpop.f32.mrb[0].mxu0
    %v137 = vpop.f32.mrb[0].mxu0
    %v138 = vadd.f32 %v86, %v137
    %v139 = vpop.f32.mrb[0].mxu0
    %140 = vdwg.mxu0
    %v141 = vmax.f32 %v135, 0.0
    %v142 = vmax.f32 %v138, 0.0
    %v143 = vpack.c.bf16 %v142, %v141
    %s144 = scalar_lea.vmem %s1, 8
    %v145 = vld [vmem:[%s144] sm:$0xf]
    %v146 = vld [vmem:[%s144 + $0x4] sm:$0x1]
    %v147 = vlaneseq
    %v148 = vshrl.u32 %v147, 7
    %v149 = vsub.s32 0, %v148
    %v150 = vrot.slane %v31, %v149
    %v153 = vunpack.c.l.b16 %v145
    %v154 = vunpack.c.l.b16 %v146
    %v155 = vpack.c.b16 %v154, %v153
    %v157 = vsel %vm92, %v143, 0
    %v160 = vsel %vm96, %v155, 0
    %162 = vmatprep.subr.bf16.mxu0 0
    %163 = vmatpush1.bf16.msra.mxu0 %v160
    %164 = vmatprep.subr.bf16.mxu0 0
    %165 = vmatpush1.bf16.msra.mxu0 0
    %166 = vmatprep.subr.bf16.mxu0 0
    %167 = vmatpush1.bf16.msra.mxu0 0
    %168 = vmatprep.subr.bf16.mxu0 0
    %169 = vmatpush1.bf16.msra.mxu0 0
    %170 = vmatprep.subr.bf16.mxu0 0
    %171 = vmatpush1.bf16.msra.mxu0 0
    %172 = vmatprep.subr.bf16.mxu0 0
    %173 = vmatpush1.bf16.msra.mxu0 0
    %174 = vmatprep.subr.bf16.mxu0 0
    %175 = vmatpush1.bf16.msra.mxu0 0
    %176 = vmatprep.subr.bf16.mxu0 0
    %177 = vmatpush1.bf16.msra.mxu0 0
    %178 = vmatprep.subr.bf16.mxu0 0
    %179 = vmatpush1.bf16.msra.mxu0 0
    %180 = vmatprep.subr.bf16.mxu0 0
    %181 = vmatpush1.bf16.msra.mxu0 0
    %182 = vmatprep.subr.bf16.mxu0 0
    %183 = vmatpush1.bf16.msra.mxu0 0
    %184 = vmatprep.subr.bf16.mxu0 0
    %185 = vmatpush1.bf16.msra.mxu0 0
    %186 = vmatprep.subr.bf16.mxu0 0
    %187 = vmatpush1.bf16.msra.mxu0 0
    %188 = vmatprep.subr.bf16.mxu0 0
    %189 = vmatpush1.bf16.msra.mxu0 0
    %190 = vmatprep.subr.bf16.mxu0 0
    %191 = vmatpush1.bf16.msra.mxu0 0
    %192 = vmatprep.subr.bf16.mxu0 0
    %193 = vmatpush1.bf16.msra.mxu0 0
    %194 = vmatprep.mubr.bf16.mxu0 0
    %195 = vmatmul.mubr.bf16.gmra.mrb[0].mxu0 %v157
    %v196 = vpop.f32.mrb[0].mxu0
    %v197 = vadd.f32 %v150, %v196
    %v198 = vpop.f32.mrb[0].mxu0
    %v199 = vpop.f32.mrb[0].mxu0
    %v200 = vadd.f32 %v150, %v199
    %v201 = vpop.f32.mrb[0].mxu0
    %202 = vdwg.mxu0
    %v203 = vmax.f32 %v197, 0.0
    %v204 = vmax.f32 %v200, 0.0
    %v205 = vpack.c.bf16 %v204, %v203
    %s206 = scalar_lea.vmem %s1, 16
    %v207 = vld [vmem:[%s206] sm:$0xf]
    %v208 = vld [vmem:[%s206 + $0x4] sm:$0x1]
    %v209 = vlaneseq
    %v210 = vshrl.u32 %v209, 7
    %v211 = vsub.s32 0, %v210
    %v212 = vrot.slane %v32, %v211
    %v215 = vunpack.c.l.b16 %v207
    %v216 = vunpack.c.l.b16 %v208
    %v217 = vpack.c.b16 %v216, %v215
    %v219 = vsel %vm92, %v205, 0
    %v222 = vsel %vm96, %v217, 0
    %224 = vmatprep.subr.bf16.mxu0 0
    %225 = vmatpush1.bf16.msra.mxu0 %v222
    %226 = vmatprep.subr.bf16.mxu0 0
    %227 = vmatpush1.bf16.msra.mxu0 0
    %228 = vmatprep.subr.bf16.mxu0 0
    %229 = vmatpush1.bf16.msra.mxu0 0
    %230 = vmatprep.subr.bf16.mxu0 0
    %231 = vmatpush1.bf16.msra.mxu0 0
    %232 = vmatprep.subr.bf16.mxu0 0
    %233 = vmatpush1.bf16.msra.mxu0 0
    %234 = vmatprep.subr.bf16.mxu0 0
    %235 = vmatpush1.bf16.msra.mxu0 0
    %236 = vmatprep.subr.bf16.mxu0 0
    %237 = vmatpush1.bf16.msra.mxu0 0
    %238 = vmatprep.subr.bf16.mxu0 0
    %239 = vmatpush1.bf16.msra.mxu0 0
    %240 = vmatprep.subr.bf16.mxu0 0
    %241 = vmatpush1.bf16.msra.mxu0 0
    %242 = vmatprep.subr.bf16.mxu0 0
    %243 = vmatpush1.bf16.msra.mxu0 0
    %244 = vmatprep.subr.bf16.mxu0 0
    %245 = vmatpush1.bf16.msra.mxu0 0
    %246 = vmatprep.subr.bf16.mxu0 0
    %247 = vmatpush1.bf16.msra.mxu0 0
    %248 = vmatprep.subr.bf16.mxu0 0
    %249 = vmatpush1.bf16.msra.mxu0 0
    %250 = vmatprep.subr.bf16.mxu0 0
    %251 = vmatpush1.bf16.msra.mxu0 0
    %252 = vmatprep.subr.bf16.mxu0 0
    %253 = vmatpush1.bf16.msra.mxu0 0
    %254 = vmatprep.subr.bf16.mxu0 0
    %255 = vmatpush1.bf16.msra.mxu0 0
    %256 = vmatprep.mubr.bf16.mxu0 0
    %257 = vmatmul.mubr.bf16.gmra.mrb[0].mxu0 %v219
    %v258 = vpop.f32.mrb[0].mxu0
    %v259 = vadd.f32 %v212, %v258
    %v260 = vpop.f32.mrb[0].mxu0
    %v261 = vpop.f32.mrb[0].mxu0
    %v262 = vadd.f32 %v212, %v261
    %v263 = vpop.f32.mrb[0].mxu0
    %264 = vdwg.mxu0
    %v265 = vmax.f32 %v259, 0.0
    %v266 = vmax.f32 %v262, 0.0
    %v267 = vpack.c.bf16 %v266, %v265
    %v268 = vld [vmem:[%s3] sm:$0xf]
    %v269 = vld [vmem:[%s3 + $0x4] sm:$0x1]
    %v270 = vld [vmem:[%s4] sm:$0x1]
    %v272 = vlaneseq
    %v273 = vshrl.u32 %v272, 7
    %v274 = vsub.s32 0, %v273
    %v275 = vrot.slane %v270, %v274
    %v279 = vunpack.c.l.b16 %v268
    %v280 = vunpack.c.l.b16 %v269
    %v281 = vpack.c.b16 %v280, %v279
    %v283 = vsel %vm92, %v267, 0
    %v286 = vsel %vm96, %v281, 0
    %288 = vmatprep.subr.bf16.mxu0 0
    %289 = vmatpush1.bf16.msra.mxu0 %v286
    %290 = vmatprep.subr.bf16.mxu0 0
    %291 = vmatpush1.bf16.msra.mxu0 0
    %292 = vmatprep.subr.bf16.mxu0 0
    %293 = vmatpush1.bf16.msra.mxu0 0
    %294 = vmatprep.subr.bf16.mxu0 0
    %295 = vmatpush1.bf16.msra.mxu0 0
    %296 = vmatprep.subr.bf16.mxu0 0
    %297 = vmatpush1.bf16.msra.mxu0 0
    %298 = vmatprep.subr.bf16.mxu0 0
    %299 = vmatpush1.bf16.msra.mxu0 0
    %300 = vmatprep.subr.bf16.mxu0 0
    %301 = vmatpush1.bf16.msra.mxu0 0
    %302 = vmatprep.subr.bf16.mxu0 0
    %303 = vmatpush1.bf16.msra.mxu0 0
    %304 = vmatprep.subr.bf16.mxu0 0
    %305 = vmatpush1.bf16.msra.mxu0 0
    %306 = vmatprep.subr.bf16.mxu0 0
    %307 = vmatpush1.bf16.msra.mxu0 0
    %308 = vmatprep.subr.bf16.mxu0 0
    %309 = vmatpush1.bf16.msra.mxu0 0
    %310 = vmatprep.subr.bf16.mxu0 0
    %311 = vmatpush1.bf16.msra.mxu0 0
    %312 = vmatprep.subr.bf16.mxu0 0
    %313 = vmatpush1.bf16.msra.mxu0 0
    %314 = vmatprep.subr.bf16.mxu0 0
    %315 = vmatpush1.bf16.msra.mxu0 0
    %316 = vmatprep.subr.bf16.mxu0 0
    %317 = vmatpush1.bf16.msra.mxu0 0
    %318 = vmatprep.subr.bf16.mxu0 0
    %319 = vmatpush1.bf16.msra.mxu0 0
    %320 = vmatprep.mubr.bf16.mxu0 0
    %321 = vmatmul.mubr.bf16.gmra.mrb[0].mxu0 %v283
    %v322 = vpop.f32.mrb[0].mxu0
    %v323 = vadd.f32 %v275, %v322
    %v324 = vpop.f32.mrb[0].mxu0
    %v325 = vpop.f32.mrb[0].mxu0
    %v326 = vadd.f32 %v275, %v325
    %v327 = vpop.f32.mrb[0].mxu0
    %328 = vdwg.mxu0
    %v329 = vld [vmem:[%s5] sm:$0xff]
    %v330 = vld [vmem:[%s5 + $0x8] sm:$0xff]
    %v331 = vld [vmem:[%s5 + $0x10] sm:$0xff]
    %v332 = vld [vmem:[%s5 + $0x18] sm:$0xff]
    %vm333 = vcmask 261120
    %v335 = vsel %vm333, %v323, 0
    %v338 = vsel %vm333, %v326, 0
    %340 = vmatprep.subr.mxu0 0.0
    %341 = vmatpush1.msra.mxu0 %v329
    %342 = vmatprep.subr.mxu0 0.0
    %343 = vmatpush1.msra.mxu0 %v330
    %344 = vmatprep.subr.mxu0 0.0
    %345 = vmatpush1.msra.mxu0 %v331
    %346 = vmatprep.subr.mxu0 0.0
    %347 = vmatpush1.msra.mxu0 %v332
    %348 = vmatprep.subr.mxu0 0.0
    %349 = vmatpush1.msra.mxu0 0.0
    %350 = vmatprep.subr.mxu0 0.0
    %351 = vmatpush1.msra.mxu0 0.0
    %352 = vmatprep.subr.mxu0 0.0
    %353 = vmatpush1.msra.mxu0 0.0
    %354 = vmatprep.subr.mxu0 0.0
    %355 = vmatpush1.msra.mxu0 0.0
    %356 = vmatprep.subr.mxu0 0.0
    %357 = vmatpush1.msra.mxu0 0.0
    %358 = vmatprep.subr.mxu0 0.0
    %359 = vmatpush1.msra.mxu0 0.0
    %360 = vmatprep.subr.mxu0 0.0
    %361 = vmatpush1.msra.mxu0 0.0
    %362 = vmatprep.subr.mxu0 0.0
    %363 = vmatpush1.msra.mxu0 0.0
    %364 = vmatprep.subr.mxu0 0.0
    %365 = vmatpush1.msra.mxu0 0.0
    %366 = vmatprep.subr.mxu0 0.0
    %367 = vmatpush1.msra.mxu0 0.0
    %368 = vmatprep.subr.mxu0 0.0
    %369 = vmatpush1.msra.mxu0 0.0
    %370 = vmatprep.subr.mxu0 0.0
    %371 = vmatpush1.msra.mxu0 0.0
    %372 = vmatprep.subr.mxu0 0.0
    %373 = vmatpush1.msra.mxu0 0.0
    %374 = vmatprep.subr.mxu0 0.0
    %375 = vmatpush1.msra.mxu0 0.0
    %376 = vmatprep.subr.mxu0 0.0
    %377 = vmatpush1.msra.mxu0 0.0
    %378 = vmatprep.subr.mxu0 0.0
    %379 = vmatpush1.msra.mxu0 0.0
    %380 = vmatprep.subr.mxu0 0.0
    %381 = vmatpush1.msra.mxu0 0.0
    %382 = vmatprep.subr.mxu0 0.0
    %383 = vmatpush1.msra.mxu0 0.0
    %384 = vmatprep.subr.mxu0 0.0
    %385 = vmatpush1.msra.mxu0 0.0
    %386 = vmatprep.subr.mxu0 0.0
    %387 = vmatpush1.msra.mxu0 0.0
    %388 = vmatprep.subr.mxu0 0.0
    %389 = vmatpush1.msra.mxu0 0.0
    %390 = vmatprep.subr.mxu0 0.0
    %391 = vmatpush1.msra.mxu0 0.0
    %392 = vmatprep.subr.mxu0 0.0
    %393 = vmatpush1.msra.mxu0 0.0
    %394 = vmatprep.subr.mxu0 0.0
    %395 = vmatpush1.msra.mxu0 0.0
    %396 = vmatprep.subr.mxu0 0.0
    %397 = vmatpush1.msra.mxu0 0.0
    %398 = vmatprep.subr.mxu0 0.0
    %399 = vmatpush1.msra.mxu0 0.0
    %400 = vmatprep.subr.mxu0 0.0
    %401 = vmatpush1.msra.mxu0 0.0
    %402 = vmatprep.subr.mxu0 0.0
    %403 = vmatpush1.msra.mxu0 0.0
    %404 = vmatprep.mubr.f32.mxu0 0.0
    %405 = vmatmul.mubr.f32.gmra.mrb[0].mxu0 %v335
    %v406 = vpop.f32.mrb[0].mxu0
    %v407 = vadd.f32 0.0, %v406
    %v408 = vpop.f32.mrb[0].mxu0
    %409 = vmatprep.mubr.f32.mxu0 0.0
    %410 = vmatmul.mubr.f32.gmra.mrb[0].mxu0 %v338
    %v411 = vpop.f32.mrb[0].mxu0
    %v412 = vadd.f32 0.0, %v411
    %v413 = vpop.f32.mrb[0].mxu0
    %414 = vdwg.mxu0
    %v415 = vrcp.pop %v407
    %v416 = vrcp.pop %v412
    %v417 = vld [vmem:[%s6] sm:$0xf]
    %vm418 = vcmask 31744
    %v420 = vsel %vm418, %v415, 0
    %v423 = vsel %vm418, %v416, 0
    %vm425 = vcmask 1043456
    %v427 = vsel %vm425, %v417, 0
    %429 = vmatprep.subr.mxu0 0.0
    %430 = vmatpush1.msra.mxu0 %v427
    %431 = vmatprep.subr.mxu0 0.0
    %432 = vmatpush1.msra.mxu0 0.0
    %433 = vmatprep.subr.mxu0 0.0
    %434 = vmatpush1.msra.mxu0 0.0
    %435 = vmatprep.subr.mxu0 0.0
    %436 = vmatpush1.msra.mxu0 0.0
    %437 = vmatprep.subr.mxu0 0.0
    %438 = vmatpush1.msra.mxu0 0.0
    %439 = vmatprep.subr.mxu0 0.0
    %440 = vmatpush1.msra.mxu0 0.0
    %441 = vmatprep.subr.mxu0 0.0
    %442 = vmatpush1.msra.mxu0 0.0
    %443 = vmatprep.subr.mxu0 0.0
    %444 = vmatpush1.msra.mxu0 0.0
    %445 = vmatprep.subr.mxu0 0.0
    %446 = vmatpush1.msra.mxu0 0.0
    %447 = vmatprep.subr.mxu0 0.0
    %448 = vmatpush1.msra.mxu0 0.0
    %449 = vmatprep.subr.mxu0 0.0
    %450 = vmatpush1.msra.mxu0 0.0
    %451 = vmatprep.subr.mxu0 0.0
    %452 = vmatpush1.msra.mxu0 0.0
    %453 = vmatprep.subr.mxu0 0.0
    %454 = vmatpush1.msra.mxu0 0.0
    %455 = vmatprep.subr.mxu0 0.0
    %456 = vmatpush1.msra.mxu0 0.0
    %457 = vmatprep.subr.mxu0 0.0
    %458 = vmatpush1.msra.mxu0 0.0
    %459 = vmatprep.subr.mxu0 0.0
    %460 = vmatpush1.msra.mxu0 0.0
    %461 = vmatprep.subr.mxu0 0.0
    %462 = vmatpush1.msra.mxu0 0.0
    %463 = vmatprep.subr.mxu0 0.0
    %464 = vmatpush1.msra.mxu0 0.0
    %465 = vmatprep.subr.mxu0 0.0
    %466 = vmatpush1.msra.mxu0 0.0
    %467 = vmatprep.subr.mxu0 0.0
    %468 = vmatpush1.msra.mxu0 0.0
    %469 = vmatprep.subr.mxu0 0.0
    %470 = vmatpush1.msra.mxu0 0.0
    %471 = vmatprep.subr.mxu0 0.0
    %472 = vmatpush1.msra.mxu0 0.0
    %473 = vmatprep.subr.mxu0 0.0
    %474 = vmatpush1.msra.mxu0 0.0
    %475 = vmatprep.subr.mxu0 0.0
    %476 = vmatpush1.msra.mxu0 0.0
    %477 = vmatprep.subr.mxu0 0.0
    %478 = vmatpush1.msra.mxu0 0.0
    %479 = vmatprep.subr.mxu0 0.0
    %480 = vmatpush1.msra.mxu0 0.0
    %481 = vmatprep.subr.mxu0 0.0
    %482 = vmatpush1.msra.mxu0 0.0
    %483 = vmatprep.subr.mxu0 0.0
    %484 = vmatpush1.msra.mxu0 0.0
    %485 = vmatprep.subr.mxu0 0.0
    %486 = vmatpush1.msra.mxu0 0.0
    %487 = vmatprep.subr.mxu0 0.0
    %488 = vmatpush1.msra.mxu0 0.0
    %489 = vmatprep.subr.mxu0 0.0
    %490 = vmatpush1.msra.mxu0 0.0
    %491 = vmatprep.subr.mxu0 0.0
    %492 = vmatpush1.msra.mxu0 0.0
    %493 = vmatprep.mubr.f32.mxu0 0.0
    %494 = vmatmul.mubr.f32.gmra.mrb[0].mxu0 %v420
    %v495 = vpop.f32.mrb[0].mxu0
    %v496 = vadd.f32 0.0, %v495
    %v497 = vpop.f32.mrb[0].mxu0
    %498 = vmatprep.mubr.f32.mxu0 0.0
    %499 = vmatmul.mubr.f32.gmra.mrb[0].mxu0 %v423
    %v500 = vpop.f32.mrb[0].mxu0
    %v501 = vadd.f32 0.0, %v500
    %v502 = vpop.f32.mrb[0].mxu0
    %503 = vdwg.mxu0
    %v504 = vmul.f32 %v323, %v496
    %v505 = vmul.f32 %v326, %v501
    %506 = vst.msk [vmem:[#allocation2] sm:$0xff] %vm333, %v504
    %507 = vst.msk [vmem:[#allocation2 + $0x8] sm:$0xff] %vm333, %v505
    // Predicated region
    $region30: #{tpu_custom_call.1} parent=1 // pred_check
      _
    $region31: #{tpu_custom_call.1} parent=1 // pred_check_branch
      %509 = sbr.rel (0) target = $region33
    $region32: #{tpu_custom_call.1} parent=1 // pred_region
      %s511 = ssub.s32 256, 256
      %512 = vsyncadd [#allocation3], %s511
      %s513 = sshll.u32 [#allocation2], 4
      %s514 = int_to_ptr.vmem [resolvable:$true] %s513
      %519 = dma.vmem_to_hbm [thread:$0]  %s514, 256, %s7, [#allocation3], 128, 128, 8
    $region33: #{tpu_custom_call.1} parent=1 // pred_fallthru
      _
    // Predicated region
    $region34: #{tpu_custom_call.1} parent=1 // pred_check
      _
    $region35: #{tpu_custom_call.1} parent=1 // pred_check_branch
      %521 = sbr.rel (0) target = $region37
    $region36: #{tpu_custom_call.1} parent=1 // pred_region
      %522 = dma.done [#allocation3], 256
    $region37: #{tpu_custom_call.1} parent=1 // pred_fallthru
      _
    %523 = vsyncpa [#allocation3], 1

</llo_original>
